<compile_context>
chip_gen: v7x
topology: tpu7x:2x2x1
jax: 0.10.0
libtpu: 0.0.40
codegen_flags: <defaults>
</compile_context>

<pallas_src>
import functools

import jax
import jax.numpy as jnp
from jax.experimental import pallas as pl
from jax.experimental.pallas import tpu as pltpu


# ----------------------------------------------------------------------------
# helpers
# ----------------------------------------------------------------------------
def _apply_activation(h, activation, neg_slope):
    if activation == "linear":
        return h
    if activation == "relu":
        return jnp.maximum(h, 0.0)
    if activation == "leaky_relu":
        return jnp.where(h >= 0.0, h, neg_slope * h)
    if activation == "gelu":
        # PyTorch nn.GELU() default is the exact (erf-based) GELU.
        return jax.nn.gelu(h, approximate=False)
    raise ValueError(f"unknown activation {activation!r}")


def _round_up(x, mult):
    return ((x + mult - 1) // mult) * mult


def _vmem_capacity_bytes():
    try:
        info = pltpu.get_tpu_info()
        cap = getattr(info, "vmem_capacity_bytes", None)
        if cap:
            return int(cap)
    except Exception:
        pass
    return 64 * 1024 * 1024  # conservative default (v7x per-TC)


def _vmem_resident_bytes(tb, d_p, m_p, k_p, L):
    """Rough VMEM footprint of the resident-weight path (default 2x buffering)."""
    buf = 2
    total = buf * tb * d_p * 4                    # x tile (f32)
    total += buf * (d_p * m_p * 2 + m_p * 4)      # w_in (bf16) + b_in (f32)
    if L > 0:
        total += buf * (L * m_p * m_p * 2 + L * m_p * 4)   # full hidden stack
    total += buf * (m_p * k_p * 2 + k_p * 4)      # w_out + b_out
    total += buf * tb * k_p * 4                   # out tile (f32)
    total += 3 * tb * m_p * 4                     # live h/a intermediates (slack)
    return total


def _vmem_streaming_bytes(tb, d_p, m_p, k_p):
    """Rough VMEM footprint of the per-layer-DMA fallback path."""
    buf = 2
    total = buf * tb * d_p * 4
    total += buf * (d_p * m_p * 2 + m_p * 4)
    total += buf * (m_p * m_p * 2 + m_p * 4)      # one hidden layer at a time
    total += buf * (m_p * k_p * 2 + k_p * 4)
    total += buf * tb * k_p * 4
    total += tb * m_p * 2                         # bf16 activation scratch
    total += 3 * tb * m_p * 4
    return total


def _choose_plan(B, d_p, m_p, k_p, L, batch_tile, budget, force_streaming):
    if B < 128:
        # small-batch latency path: sub-128 tile, multiple of 16 (bf16 packing)
        tb_cands = [_round_up(max(B, 8), 16)]
    else:
        cap = min(_round_up(batch_tile, 128), _round_up(B, 128))
        tb_cands = [t for t in (1024, 768, 512, 384, 256, 128) if t <= cap] or [128]

    allow_resident = (L == 0) or (not force_streaming)
    if allow_resident:
        for tb in tb_cands:
            if _vmem_resident_bytes(tb, d_p, m_p, k_p, L) <= budget:
                return "resident", tb
        if L == 0:  # no streaming variant without hidden layers; smallest tile
            return "resident", tb_cands[-1]
    for tb in tb_cands:
        if _vmem_streaming_bytes(tb, d_p, m_p, k_p) <= budget:
            return "streaming", tb
    return "streaming", tb_cands[-1]


# ----------------------------------------------------------------------------
# kernels
# ----------------------------------------------------------------------------
def _mlp_resident_kernel(x_ref, w_in_ref, b_in_ref, *rest,
                         L, activation, neg_slope, compute_dtype):
    """1-D grid over batch tiles; whole weight stack resident in VMEM;
    static in-kernel layer walk.  rest = [w_hid, b_hid,] w_out, b_out, out."""
    if L > 0:
        w_hid_ref, b_hid_ref, w_out_ref, b_out_ref, o_ref = rest
    else:
        w_out_ref, b_out_ref, o_ref = rest

    x = x_ref[...].astype(compute_dtype)
    h = jnp.dot(x, w_in_ref[...], preferred_element_type=jnp.float32) + b_in_ref[...]
    a = _apply_activation(h, activation, neg_slope).astype(compute_dtype)

    for l in range(L):  # static unroll; stack is VMEM-resident
        h = (jnp.dot(a, w_hid_ref[l], preferred_element_type=jnp.float32)
             + b_hid_ref[l])
        a = _apply_activation(h, activation, neg_slope).astype(compute_dtype)

    out = (jnp.dot(a, w_out_ref[...], preferred_element_type=jnp.float32)
           + b_out_ref[...])
    o_ref[...] = out.astype(o_ref.dtype)


def _mlp_streaming_kernel(x_ref, w_in_ref, b_in_ref, w_hid_ref, b_hid_ref,
                          w_out_ref, b_out_ref, o_ref, a_ref,
                          *, activation, neg_slope, compute_dtype):
    """Grid = (batch_tiles, L): axis 1 walks hidden layers, DMAing exactly one
    hidden weight matrix per step; a_ref (bf16 VMEM scratch) carries the
    post-activation running value across the layer axis."""
    l = pl.program_id(1)
    last = pl.num_programs(1) - 1

    @pl.when(l == 0)
    def _():
        h0 = (jnp.dot(x_ref[...].astype(compute_dtype), w_in_ref[...],
                      preferred_element_type=jnp.float32) + b_in_ref[...])
        a_ref[...] = _apply_activation(h0, activation, neg_slope).astype(compute_dtype)

    h = (jnp.dot(a_ref[...], w_hid_ref[0], preferred_element_type=jnp.float32)
         + b_hid_ref[0])
    a = _apply_activation(h, activation, neg_slope).astype(compute_dtype)
    a_ref[...] = a

    @pl.when(l == last)
    def _():
        out = (jnp.dot(a, w_out_ref[...], preferred_element_type=jnp.float32)
               + b_out_ref[...])
        o_ref[...] = out.astype(o_ref.dtype)


# ----------------------------------------------------------------------------
# one-time parameter preparation (transpose / pad / cast — NOT per forward call)
# ----------------------------------------------------------------------------
def prepare_params(params, *, compute_dtype=jnp.bfloat16, lane=128):
    """Transpose weights to (in, out), zero-pad feature dims to multiples of
    `lane`, cast matmul operands to compute_dtype (biases stay f32).
    NOTE: bf16 matmul operands with f32 accumulation is the accepted precision
    contract; pass compute_dtype=jnp.float32 for full-f32 matmuls."""
    m, d = params["w_in"].shape
    k = params["w_out"].shape[0]
    L = params["w_hid"].shape[0]
    d_p, m_p, k_p = (_round_up(v, lane) for v in (d, m, k))

    def pad2(a, r, c):
        return jnp.pad(a, ((0, r - a.shape[0]), (0, c - a.shape[1])))

    prep = {
        "w_in": pad2(params["w_in"].T.astype(compute_dtype), d_p, m_p),       # (d_p, m_p)
        "b_in": jnp.pad(params["b_in"].astype(jnp.float32),
                        (0, m_p - m)).reshape(1, m_p),                          # (1, m_p)
        "w_out": pad2(params["w_out"].T.astype(compute_dtype), m_p, k_p),       # (m_p, k_p)
        "b_out": jnp.pad(params["b_out"].astype(jnp.float32),
                         (0, k_p - k)).reshape(1, k_p),                         # (1, k_p)
        "dims": (d, m, k, L),
        "padded": (d_p, m_p, k_p),
        "compute_dtype": compute_dtype,
    }
    if L > 0:
        prep["w_hid"] = jnp.pad(
            jnp.transpose(params["w_hid"], (0, 2, 1)).astype(compute_dtype),
            ((0, 0), (0, m_p - m), (0, m_p - m)))                               # (L, m_p, m_p)
        prep["b_hid"] = jnp.pad(params["b_hid"].astype(jnp.float32),
                                ((0, 0), (0, m_p - m))).reshape(L, 1, m_p)      # (L, 1, m_p)
    else:
        prep["w_hid"] = None
        prep["b_hid"] = None
    return prep


# ----------------------------------------------------------------------------
# forward
# ----------------------------------------------------------------------------
def sequential_nn_forward(x, prep, *, activation="linear", neg_slope=0.01,
                          batch_tile=512, force_streaming=False):
    """x: (B, d) f32.  prep: output of prepare_params()."""
    d, m, k, L = prep["dims"]
    d_p, m_p, k_p = prep["padded"]
    cd = prep["compute_dtype"]
    B = x.shape[0]

    # generation-aware VMEM limit: ~100 MiB on 128-MiB parts, ~56 MiB on v7x.
    cap = _vmem_capacity_bytes()
    vmem_limit = max(32 * 1024 * 1024,
                     min(cap - 8 * 1024 * 1024, 100 * 1024 * 1024))
    budget = vmem_limit - 6 * 1024 * 1024  # headroom for Mosaic internal scratch

    mode, tb = _choose_plan(B, d_p, m_p, k_p, L, batch_tile, budget,
                            force_streaming)

    B_p = _round_up(B, tb)
    if (B_p != B) or (d_p != d):
        x_use = jnp.zeros((B_p, d_p), x.dtype).at[:B, :d].set(x)
    else:
        x_use = x  # no host-side pad/copy needed; cast happens in-kernel
    nb = B_p // tb

    if mode == "resident":
        kernel = functools.partial(
            _mlp_resident_kernel, L=L, activation=activation,
            neg_slope=neg_slope, compute_dtype=cd)
        in_specs = [
            pl.BlockSpec((tb, d_p), lambda i: (i, 0)),      # x batch tile
            pl.BlockSpec((d_p, m_p), lambda i: (0, 0)),     # w_in^T
            pl.BlockSpec((1, m_p), lambda i: (0, 0)),       # b_in
        ]
        args = [x_use, prep["w_in"], prep["b_in"]]
        if L > 0:
            in_specs += [
                pl.BlockSpec((L, m_p, m_p), lambda i: (0, 0, 0)),  # full stack
                pl.BlockSpec((L, 1, m_p), lambda i: (0, 0, 0)),
            ]
            args += [prep["w_hid"], prep["b_hid"]]
        in_specs += [
            pl.BlockSpec((m_p, k_p), lambda i: (0, 0)),     # w_out^T
            pl.BlockSpec((1, k_p), lambda i: (0, 0)),       # b_out
        ]
        args += [prep["w_out"], prep["b_out"]]

        out = pl.pallas_call(
            kernel,
            out_shape=jax.ShapeDtypeStruct((B_p, k_p), jnp.float32),
            grid_spec=pltpu.PrefetchScalarGridSpec(
                num_scalar_prefetch=0,
                grid=(nb,),
                in_specs=in_specs,
                out_specs=pl.BlockSpec((tb, k_p), lambda i: (i, 0)),
            ),
            compiler_params=pltpu.CompilerParams(
                dimension_semantics=("parallel",),
                vmem_limit_bytes=vmem_limit),
        )(*args)
    else:
        kernel = functools.partial(
            _mlp_streaming_kernel, activation=activation,
            neg_slope=neg_slope, compute_dtype=cd)
        out = pl.pallas_call(
            kernel,
            out_shape=jax.ShapeDtypeStruct((B_p, k_p), jnp.float32),
            grid_spec=pltpu.PrefetchScalarGridSpec(
                num_scalar_prefetch=0,
                grid=(nb, L),
                in_specs=[
                    pl.BlockSpec((tb, d_p), lambda i, l: (i, 0)),         # x
                    pl.BlockSpec((d_p, m_p), lambda i, l: (0, 0)),        # w_in^T
                    pl.BlockSpec((1, m_p), lambda i, l: (0, 0)),          # b_in
                    pl.BlockSpec((1, m_p, m_p), lambda i, l: (l, 0, 0)),  # w_hid[l]^T
                    pl.BlockSpec((1, 1, m_p), lambda i, l: (l, 0, 0)),    # b_hid[l]
                    pl.BlockSpec((m_p, k_p), lambda i, l: (0, 0)),        # w_out^T
                    pl.BlockSpec((1, k_p), lambda i, l: (0, 0)),          # b_out
                ],
                out_specs=pl.BlockSpec((tb, k_p), lambda i, l: (i, 0)),
                scratch_shapes=[pltpu.VMEM((tb, m_p), cd)],  # bf16 running act
            ),
            compiler_params=pltpu.CompilerParams(
                dimension_semantics=("parallel", "arbitrary"),
                vmem_limit_bytes=vmem_limit),
        )(x_use, prep["w_in"], prep["b_in"], prep["w_hid"], prep["b_hid"],
          prep["w_out"], prep["b_out"])

    return out[:B, :k].astype(x.dtype)


# ----------------------------------------------------------------------------
# init + reference (plain JAX, mirrors the PyTorch nn.Sequential)
# ----------------------------------------------------------------------------
def init_params(key, d, m, k, L):
    """Deterministic kaiming-normal-style init (matches __init__ shapes)."""
    keys = jax.random.split(key, 2 * L + 4)

    def kaiming(kk, fan_in, shape):
        return jax.random.normal(kk, shape, jnp.float32) * jnp.sqrt(1.0 / fan_in)

    return {
        "w_in": kaiming(keys[0], d, (m, d)),
        "b_in": jax.random.normal(keys[1], (m,), jnp.float32),
        "w_out": kaiming(keys[2], m, (k, m)),
        "b_out": jax.random.normal(keys[3], (k,), jnp.float32),
        "w_hid": (jnp.stack([kaiming(keys[4 + 2 * i], m, (m, m)) for i in range(L)])
                  if L > 0 else jnp.zeros((0, m, m), jnp.float32)),
        "b_hid": (jnp.stack([jax.random.normal(keys[5 + 2 * i], (m,), jnp.float32)
                             for i in range(L)])
                  if L > 0 else jnp.zeros((0, m), jnp.float32)),
    }
    # TODO(synk): other init_weights variants (xavier/const) are host-side init, not kernel work.


def reference_forward(x, params, *, activation="linear", neg_slope=0.01,
                      compute_dtype=jnp.float32):
    """Plain-JAX reference; compute_dtype mirrors the kernel's matmul casting."""
    def act(h):
        return _apply_activation(h, activation, neg_slope)

    def lin(h, w, b):
        return jnp.dot(h.astype(compute_dtype), w.T.astype(compute_dtype),
                       preferred_element_type=jnp.float32) + b

    h = lin(x, params["w_in"], params["b_in"])
    for i in range(params["w_hid"].shape[0]):
        h = lin(act(h), params["w_hid"][i], params["b_hid"][i])
    return lin(act(h), params["w_out"], params["b_out"])


# ----------------------------------------------------------------------------
# demo
# ----------------------------------------------------------------------------
if __name__ == "__main__":
    # Small shapes: d=32 input dim, m=32 hidden, k=8 output, L=2 hidden layers,
    # batch B=8. Activation 'relu' (module default 'linear' also supported).
    d, m, k, L = 32, 32, 8, 2
    B = 8
    activation = "relu"

    key = jax.random.PRNGKey(0)
    pkey, xkey = jax.random.split(key)
    params = init_params(pkey, d, m, k, L)
    x = jax.random.normal(xkey, (B, d), jnp.float32)

    prep = prepare_params(params, compute_dtype=jnp.bfloat16)  # one-time prep

    # Reference with the same bf16 matmul-operand quantization, f32 accumulate.
    ref = reference_forward(x, params, activation=activation,
                            compute_dtype=jnp.bfloat16)

    # 1) default (resident-weight) path
    out_res = jax.block_until_ready(
        sequential_nn_forward(x, prep, activation=activation))
    assert out_res.shape == (B, k)
    assert jnp.allclose(out_res, ref, atol=2e-2, rtol=2e-2), \
        "resident path mismatch vs reference"

    # 2) streaming fallback path (forced, to verify the big-model route)
    out_str = jax.block_until_ready(
        sequential_nn_forward(x, prep, activation=activation,
                              force_streaming=True))
    assert jnp.allclose(out_str, ref, atol=2e-2, rtol=2e-2), \
        "streaming path mismatch vs reference"

    # 3) L == 0 (lin_in -> activ -> lin_out) smoke test
    params0 = init_params(pkey, d, m, k, 0)
    prep0 = prepare_params(params0, compute_dtype=jnp.bfloat16)
    out0 = jax.block_until_ready(
        sequential_nn_forward(x, prep0, activation=activation))
    ref0 = reference_forward(x, params0, activation=activation,
                             compute_dtype=jnp.bfloat16)
    assert jnp.allclose(out0, ref0, atol=2e-2, rtol=2e-2), \
        "L=0 path mismatch vs reference"

    print("KERNEL_OK")
</pallas_src>

<mosaic_0001>
module attributes {stable_mosaic.version = 11 : i64} {
  func.func @_mlp_resident_kernel(%arg0: i32, %arg1: memref<16x128xf32, #tpu.memory_space<vmem>>, %arg2: memref<128x128xbf16, #tpu.memory_space<vmem>>, %arg3: memref<1x128xf32, #tpu.memory_space<vmem>>, %arg4: memref<2x128x128xbf16, #tpu.memory_space<vmem>>, %arg5: memref<2x1x128xf32, #tpu.memory_space<vmem>>, %arg6: memref<128x128xbf16, #tpu.memory_space<vmem>>, %arg7: memref<1x128xf32, #tpu.memory_space<vmem>>, %arg8: memref<16x128xf32, #tpu.memory_space<vmem>>) attributes {dimension_semantics = [#tpu.dimension_semantics<parallel>], iteration_bounds = array<i64: 1>, scalar_prefetch = 0 : i64, scratch_operands = 0 : i64, tpu.core_type = #tpu.core_type<tc>, window_params = [{transform_indices = @transform_0, window_bounds = array<i64: 16, 128>}, {pipeline_mode = #tpu.pipeline_mode<synchronous>, transform_indices = @transform_1, window_bounds = array<i64: 128, 128>}, {pipeline_mode = #tpu.pipeline_mode<synchronous>, transform_indices = @transform_2, window_bounds = array<i64: 1, 128>}, {pipeline_mode = #tpu.pipeline_mode<synchronous>, transform_indices = @transform_3, window_bounds = array<i64: 2, 128, 128>}, {pipeline_mode = #tpu.pipeline_mode<synchronous>, transform_indices = @transform_4, window_bounds = array<i64: 2, 1, 128>}, {pipeline_mode = #tpu.pipeline_mode<synchronous>, transform_indices = @transform_5, window_bounds = array<i64: 128, 128>}, {pipeline_mode = #tpu.pipeline_mode<synchronous>, transform_indices = @transform_6, window_bounds = array<i64: 1, 128>}, {transform_indices = @transform_7, window_bounds = array<i64: 16, 128>}]} {
    %c0 = arith.constant 0 : index
    %c0_0 = arith.constant 0 : index
    %0 = vector.load %arg1[%c0, %c0_0] : memref<16x128xf32, #tpu.memory_space<vmem>>, vector<16x128xf32>
    %1 = arith.truncf %0 : vector<16x128xf32> to vector<16x128xbf16>
    %c0_1 = arith.constant 0 : index
    %c0_2 = arith.constant 0 : index
    %2 = vector.load %arg2[%c0_1, %c0_2] : memref<128x128xbf16, #tpu.memory_space<vmem>>, vector<128x128xbf16>
    %cst = arith.constant dense<0.000000e+00> : vector<16x128xf32>
    %3 = tpu.matmul %1, %2, %cst {dimension_numbers = #tpu.dot_dimension_numbers<[1], [0], [0], [1], [0, 0, 1, 1], [], []>} : vector<16x128xbf16>, vector<128x128xbf16>, vector<16x128xf32> -> vector<16x128xf32>
    %c0_3 = arith.constant 0 : index
    %c0_4 = arith.constant 0 : index
    %4 = vector.load %arg3[%c0_3, %c0_4] : memref<1x128xf32, #tpu.memory_space<vmem>>, vector<1x128xf32>
    %5 = vector.broadcast %4 : vector<1x128xf32> to vector<16x128xf32>
    %6 = arith.addf %3, %5 : vector<16x128xf32>
    %cst_5 = arith.constant 0.000000e+00 : f32
    %7 = vector.broadcast %cst_5 : f32 to vector<16x128xf32>
    %8 = arith.maximumf %6, %7 : vector<16x128xf32>
    %9 = arith.truncf %8 : vector<16x128xf32> to vector<16x128xbf16>
    %c0_6 = arith.constant 0 : index
    %c0_7 = arith.constant 0 : index
    %c0_8 = arith.constant 0 : index
    %10 = vector.load %arg4[%c0_6, %c0_7, %c0_8] : memref<2x128x128xbf16, #tpu.memory_space<vmem>>, vector<1x128x128xbf16>
    %11 = vector.shape_cast %10 : vector<1x128x128xbf16> to vector<128x128xbf16>
    %cst_9 = arith.constant dense<0.000000e+00> : vector<16x128xf32>
    %12 = tpu.matmul %9, %11, %cst_9 {dimension_numbers = #tpu.dot_dimension_numbers<[1], [0], [0], [1], [0, 0, 1, 1], [], []>} : vector<16x128xbf16>, vector<128x128xbf16>, vector<16x128xf32> -> vector<16x128xf32>
    %c0_10 = arith.constant 0 : index
    %c0_11 = arith.constant 0 : index
    %c0_12 = arith.constant 0 : index
    %13 = vector.load %arg5[%c0_10, %c0_11, %c0_12] : memref<2x1x128xf32, #tpu.memory_space<vmem>>, vector<1x1x128xf32>
    %14 = vector.shape_cast %13 : vector<1x1x128xf32> to vector<1x128xf32>
    %15 = vector.broadcast %14 : vector<1x128xf32> to vector<16x128xf32>
    %16 = arith.addf %12, %15 : vector<16x128xf32>
    %cst_13 = arith.constant 0.000000e+00 : f32
    %17 = vector.broadcast %cst_13 : f32 to vector<16x128xf32>
    %18 = arith.maximumf %16, %17 : vector<16x128xf32>
    %19 = arith.truncf %18 : vector<16x128xf32> to vector<16x128xbf16>
    %c1 = arith.constant 1 : index
    %c0_14 = arith.constant 0 : index
    %c0_15 = arith.constant 0 : index
    %20 = vector.load %arg4[%c1, %c0_14, %c0_15] : memref<2x128x128xbf16, #tpu.memory_space<vmem>>, vector<1x128x128xbf16>
    %21 = vector.shape_cast %20 : vector<1x128x128xbf16> to vector<128x128xbf16>
    %cst_16 = arith.constant dense<0.000000e+00> : vector<16x128xf32>
    %22 = tpu.matmul %19, %21, %cst_16 {dimension_numbers = #tpu.dot_dimension_numbers<[1], [0], [0], [1], [0, 0, 1, 1], [], []>} : vector<16x128xbf16>, vector<128x128xbf16>, vector<16x128xf32> -> vector<16x128xf32>
    %c1_17 = arith.constant 1 : index
    %c0_18 = arith.constant 0 : index
    %c0_19 = arith.constant 0 : index
    %23 = vector.load %arg5[%c1_17, %c0_18, %c0_19] : memref<2x1x128xf32, #tpu.memory_space<vmem>>, vector<1x1x128xf32>
    %24 = vector.shape_cast %23 : vector<1x1x128xf32> to vector<1x128xf32>
    %25 = vector.broadcast %24 : vector<1x128xf32> to vector<16x128xf32>
    %26 = arith.addf %22, %25 : vector<16x128xf32>
    %cst_20 = arith.constant 0.000000e+00 : f32
    %27 = vector.broadcast %cst_20 : f32 to vector<16x128xf32>
    %28 = arith.maximumf %26, %27 : vector<16x128xf32>
    %29 = arith.truncf %28 : vector<16x128xf32> to vector<16x128xbf16>
    %c0_21 = arith.constant 0 : index
    %c0_22 = arith.constant 0 : index
    %30 = vector.load %arg6[%c0_21, %c0_22] : memref<128x128xbf16, #tpu.memory_space<vmem>>, vector<128x128xbf16>
    %cst_23 = arith.constant dense<0.000000e+00> : vector<16x128xf32>
    %31 = tpu.matmul %29, %30, %cst_23 {dimension_numbers = #tpu.dot_dimension_numbers<[1], [0], [0], [1], [0, 0, 1, 1], [], []>} : vector<16x128xbf16>, vector<128x128xbf16>, vector<16x128xf32> -> vector<16x128xf32>
    %c0_24 = arith.constant 0 : index
    %c0_25 = arith.constant 0 : index
    %32 = vector.load %arg7[%c0_24, %c0_25] : memref<1x128xf32, #tpu.memory_space<vmem>>, vector<1x128xf32>
    %33 = vector.broadcast %32 : vector<1x128xf32> to vector<16x128xf32>
    %34 = arith.addf %31, %33 : vector<16x128xf32>
    %c0_26 = arith.constant 0 : index
    %c0_27 = arith.constant 0 : index
    %35 = vector.load %arg8[%c0_26, %c0_27] : memref<16x128xf32, #tpu.memory_space<vmem>>, vector<16x128xf32>
    tpu.vector_store %arg8[%c0_26, %c0_27], %34 {strides = array<i32>} : memref<16x128xf32, #tpu.memory_space<vmem>>, vector<16x128xf32>,
    return
  }
  func.func @transform_0(%arg0: i32) -> (i32, i32) {
    %c0_i32 = arith.constant 0 : i32
    %c0_i32_0 = arith.constant 0 : i32
    return %arg0, %c0_i32 : i32, i32
  }
  func.func @transform_1(%arg0: i32) -> (i32, i32) {
    %c0_i32 = arith.constant 0 : i32
    %c0_i32_0 = arith.constant 0 : i32
    %c0_i32_1 = arith.constant 0 : i32
    return %c0_i32, %c0_i32_0 : i32, i32
  }
  func.func @transform_2(%arg0: i32) -> (i32, i32) {
    %c0_i32 = arith.constant 0 : i32
    %c0_i32_0 = arith.constant 0 : i32
    %c0_i32_1 = arith.constant 0 : i32
    return %c0_i32, %c0_i32_0 : i32, i32
  }
  func.func @transform_3(%arg0: i32) -> (i32, i32, i32) {
    %c0_i32 = arith.constant 0 : i32
    %c0_i32_0 = arith.constant 0 : i32
    %c0_i32_1 = arith.constant 0 : i32
    %c0_i32_2 = arith.constant 0 : i32
    return %c0_i32, %c0_i32_0, %c0_i32_1 : i32, i32, i32
  }
  func.func @transform_4(%arg0: i32) -> (i32, i32, i32) {
    %c0_i32 = arith.constant 0 : i32
    %c0_i32_0 = arith.constant 0 : i32
    %c0_i32_1 = arith.constant 0 : i32
    %c0_i32_2 = arith.constant 0 : i32
    return %c0_i32, %c0_i32_0, %c0_i32_1 : i32, i32, i32
  }
  func.func @transform_5(%arg0: i32) -> (i32, i32) {
    %c0_i32 = arith.constant 0 : i32
    %c0_i32_0 = arith.constant 0 : i32
    %c0_i32_1 = arith.constant 0 : i32
    return %c0_i32, %c0_i32_0 : i32, i32
  }
  func.func @transform_6(%arg0: i32) -> (i32, i32) {
    %c0_i32 = arith.constant 0 : i32
    %c0_i32_0 = arith.constant 0 : i32
    %c0_i32_1 = arith.constant 0 : i32
    return %c0_i32, %c0_i32_0 : i32, i32
  }
  func.func @transform_7(%arg0: i32) -> (i32, i32) {
    %c0_i32 = arith.constant 0 : i32
    %c0_i32_0 = arith.constant 0 : i32
    return %arg0, %c0_i32 : i32, i32
  }
}

</mosaic_0001>

<llo_original>
// kernel: tpu_custom_call.1
$region0: #{tpu_custom_call.1}
  #allocation0 [shape = 'u32[]', space=smem, size = 0x4, offset = 0x4, fixed_abs, tag = 'smem constant byte address 0x4 - core index']
  #allocation1 [shape = 'u32[144,128]{1,0:T(1,128)}', space=vmem, size = 0x12000, scoped, tag = 'internal scratch']
  %s0 = inlined_call_operand.hbm [shape: f32[16,128], index: 0, kind: input, shape index: {}]
  %s1 = inlined_call_operand.hbm [shape: bf16[128,128], index: 1, kind: input, shape index: {}]
  %s2 = inlined_call_operand.vmem [shape: f32[1,128], index: 2, kind: input, shape index: {}]
  %s3 = inlined_call_operand.hbm [shape: bf16[2,128,128], index: 3, kind: input, shape index: {}]
  %s4 = inlined_call_operand.vmem [shape: f32[2,1,128], index: 4, kind: input, shape index: {}]
  %s5 = inlined_call_operand.hbm [shape: bf16[128,128], index: 5, kind: input, shape index: {}]
  %s6 = inlined_call_operand.vmem [shape: f32[1,128], index: 6, kind: input, shape index: {}]
  %s7 = inlined_call_operand.hbm [shape: f32[16,128], index: 7, kind: output, shape index: {}]
  %s8 = sld [smem:[#allocation0]]
  $region54: #{tpu_custom_call.1} parent=0
    _
  %s10 = ssub.s32 1, %s8
  %s11 = scalar_select 0, %s10, %s8
  $region1: #{tpu_custom_call.1} parent=0
    #allocation2 [shape = 'u8[8192]{0}', space=vmem, size = 0x2000, scoped, tag = 'input window, operand 0, single buffered']
    #allocation3 [shape = 's32[1]{0}', space=sflag, size = 0x4, scoped, tag = 'scoped memory for tpu_custom_call.1']
    #allocation4 [shape = 's32[1]{0}', space=sflag, size = 0x4, scoped, tag = 'scoped memory for tpu_custom_call.1']
    #allocation5 [shape = 'u8[32768]{0}', space=vmem, size = 0x8000, scoped, tag = 'input window, operand 1, single buffered']
    #allocation6 [shape = 's32[1]{0}', space=sflag, size = 0x4, scoped, tag = 'scoped memory for tpu_custom_call.1']
    #allocation7 [shape = 'u8[65536]{0}', space=vmem, size = 0x10000, scoped, tag = 'input window, operand 3, single buffered']
    #allocation8 [shape = 'u8[32768]{0}', space=vmem, size = 0x8000, scoped, tag = 'input window, operand 5, single buffered']
    #allocation9 [shape = 's32[1]{0}', space=sflag, size = 0x4, scoped, tag = 'scoped memory for tpu_custom_call.1']
    #allocation10 [shape = 'u8[8192]{0}', space=vmem, size = 0x2000, scoped, tag = 'output window, operand 0, single buffered']
    %12 = vsyncpa [#allocation3], 0
    %13 = vsyncpa [#allocation6], 0
    %14 = vsyncpa [#allocation9], 0
    %15 = vsyncpa [#allocation4], 0
    // Predicated region
    $region2: #{tpu_custom_call.1} parent=1 // pred_check
      _
    $region3: #{tpu_custom_call.1} parent=1 // pred_check_branch
      %17 = sbr.rel (0) target = $region5
    $region4: #{tpu_custom_call.1} parent=1 // pred_region
      %s19 = ssub.s32 256, 256
      %20 = vsyncadd [#allocation3], %s19
      %s21 = sshll.u32 [#allocation2], 4
      %s22 = int_to_ptr.vmem [resolvable:$true] %s21
      %27 = dma.hbm_to_vmem [thread:$0]  %s0, 256, %s22, [#allocation3], 128, 128, 8
    $region5: #{tpu_custom_call.1} parent=1 // pred_fallthru
      _
    // Predicated region
    $region6: #{tpu_custom_call.1} parent=1 // pred_check
      _
    $region7: #{tpu_custom_call.1} parent=1 // pred_check_branch
      %29 = sbr.rel (0) target = $region9
    $region8: #{tpu_custom_call.1} parent=1 // pred_region
      %s31 = ssub.s32 1024, 1024
      %32 = vsyncadd [#allocation6], %s31
      %s33 = sshll.u32 [#allocation5], 4
      %s34 = int_to_ptr.vmem [resolvable:$true] %s33
      %39 = dma.hbm_to_vmem [thread:$0]  %s1, 1024, %s34, [#allocation6], 64, 64, 4
    $region9: #{tpu_custom_call.1} parent=1 // pred_fallthru
      _
    // Predicated region
    $region10: #{tpu_custom_call.1} parent=1 // pred_check
      _
    $region11: #{tpu_custom_call.1} parent=1 // pred_check_branch
      %41 = sbr.rel (0) target = $region13
    $region12: #{tpu_custom_call.1} parent=1 // pred_region
      _
    $region13: #{tpu_custom_call.1} parent=1 // pred_fallthru
      _
    // Predicated region
    $region14: #{tpu_custom_call.1} parent=1 // pred_check
      _
    $region15: #{tpu_custom_call.1} parent=1 // pred_check_branch
      %43 = sbr.rel (0) target = $region17
    $region16: #{tpu_custom_call.1} parent=1 // pred_region
      %s45 = ssub.s32 2048, 2048
      %46 = vsyncadd [#allocation6], %s45
      %s47 = sshll.u32 [#allocation7], 4
      %s48 = int_to_ptr.vmem [resolvable:$true] %s47
      %53 = dma.hbm_to_vmem [thread:$0]  %s3, 2048, %s48, [#allocation6], 64, 64, 4
    $region17: #{tpu_custom_call.1} parent=1 // pred_fallthru
      _
    // Predicated region
    $region18: #{tpu_custom_call.1} parent=1 // pred_check
      _
    $region19: #{tpu_custom_call.1} parent=1 // pred_check_branch
      %55 = sbr.rel (0) target = $region21
    $region20: #{tpu_custom_call.1} parent=1 // pred_region
      _
    $region21: #{tpu_custom_call.1} parent=1 // pred_fallthru
      _
    // Predicated region
    $region22: #{tpu_custom_call.1} parent=1 // pred_check
      _
    $region23: #{tpu_custom_call.1} parent=1 // pred_check_branch
      %57 = sbr.rel (0) target = $region25
    $region24: #{tpu_custom_call.1} parent=1 // pred_region
      %s59 = ssub.s32 1024, 1024
      %60 = vsyncadd [#allocation9], %s59
      %s61 = sshll.u32 [#allocation8], 4
      %s62 = int_to_ptr.vmem [resolvable:$true] %s61
      %67 = dma.hbm_to_vmem [thread:$0]  %s5, 1024, %s62, [#allocation9], 64, 64, 4
    $region25: #{tpu_custom_call.1} parent=1 // pred_fallthru
      _
    // Predicated region
    $region26: #{tpu_custom_call.1} parent=1 // pred_check
      _
    $region27: #{tpu_custom_call.1} parent=1 // pred_check_branch
      %69 = sbr.rel (0) target = $region29
    $region28: #{tpu_custom_call.1} parent=1 // pred_region
      _
    $region29: #{tpu_custom_call.1} parent=1 // pred_fallthru
      _
    // Predicated region
    $region30: #{tpu_custom_call.1} parent=1 // pred_check
      _
    $region31: #{tpu_custom_call.1} parent=1 // pred_check_branch
      %71 = sbr.rel (0) target = $region33
    $region32: #{tpu_custom_call.1} parent=1 // pred_region
      %72 = dma.done [#allocation3], 256
    $region33: #{tpu_custom_call.1} parent=1 // pred_fallthru
      _
    // Predicated region
    $region34: #{tpu_custom_call.1} parent=1 // pred_check
      _
    $region35: #{tpu_custom_call.1} parent=1 // pred_check_branch
      %74 = sbr.rel (0) target = $region37
    $region36: #{tpu_custom_call.1} parent=1 // pred_region
      %75 = dma.done [#allocation6], 1024
    $region37: #{tpu_custom_call.1} parent=1 // pred_fallthru
      _
    // Predicated region
    $region38: #{tpu_custom_call.1} parent=1 // pred_check
      _
    $region39: #{tpu_custom_call.1} parent=1 // pred_check_branch
      %77 = sbr.rel (0) target = $region41
    $region40: #{tpu_custom_call.1} parent=1 // pred_region
      %78 = dma.done [#allocation6], 2048
    $region41: #{tpu_custom_call.1} parent=1 // pred_fallthru
      _
    // Predicated region
    $region42: #{tpu_custom_call.1} parent=1 // pred_check
      _
    $region43: #{tpu_custom_call.1} parent=1 // pred_check_branch
      %80 = sbr.rel (0) target = $region45
    $region44: #{tpu_custom_call.1} parent=1 // pred_region
      %81 = dma.done [#allocation9], 1024
    $region45: #{tpu_custom_call.1} parent=1 // pred_fallthru
      _
    %v83 = vld [vmem:[#allocation2] sm:$0xff]
    %v84 = vld [vmem:[#allocation2 + $0x8] sm:$0xff]
    %v85 = vpack.c.bf16 %v84, %v83
    %v86 = vld [vmem:[#allocation5] sm:$0xf]
    %v87 = vld [vmem:[#allocation5 + $0x4] sm:$0xf]
    %v88 = vld [vmem:[#allocation5 + $0x8] sm:$0xf]
    %v89 = vld [vmem:[#allocation5 + $0xc] sm:$0xf]
    %v90 = vld [vmem:[#allocation5 + $0x10] sm:$0xf]
    %v91 = vld [vmem:[#allocation5 + $0x14] sm:$0xf]
    %v92 = vld [vmem:[#allocation5 + $0x18] sm:$0xf]
    %v93 = vld [vmem:[#allocation5 + $0x1c] sm:$0xf]
    %v94 = vld [vmem:[#allocation5 + $0x20] sm:$0xf]
    %v95 = vld [vmem:[#allocation5 + $0x24] sm:$0xf]
    %v96 = vld [vmem:[#allocation5 + $0x28] sm:$0xf]
    %v97 = vld [vmem:[#allocation5 + $0x2c] sm:$0xf]
    %v98 = vld [vmem:[#allocation5 + $0x30] sm:$0xf]
    %v99 = vld [vmem:[#allocation5 + $0x34] sm:$0xf]
    %v100 = vld [vmem:[#allocation5 + $0x38] sm:$0xf]
    %v101 = vld [vmem:[#allocation5 + $0x3c] sm:$0xf]
    %v102 = vld [vmem:[%s2] sm:$0x1]
    %v104 = vlaneseq
    %v105 = vshrl.u32 %v104, 7
    %v106 = vsub.s32 0, %v105
    %v107 = vrot.slane %v102, %v106
    %v125 = vunpack.c.l.b16 %v86
    %v126 = vunpack.c.l.b16 %v87
    %v127 = vunpack.c.l.b16 %v88
    %v128 = vunpack.c.l.b16 %v89
    %v129 = vunpack.c.l.b16 %v90
    %v130 = vunpack.c.l.b16 %v91
    %v131 = vunpack.c.l.b16 %v92
    %v132 = vunpack.c.l.b16 %v93
    %v133 = vunpack.c.l.b16 %v94
    %v134 = vunpack.c.l.b16 %v95
    %v135 = vunpack.c.l.b16 %v96
    %v136 = vunpack.c.l.b16 %v97
    %v137 = vunpack.c.l.b16 %v98
    %v138 = vunpack.c.l.b16 %v99
    %v139 = vunpack.c.l.b16 %v100
    %v140 = vunpack.c.l.b16 %v101
    %v141 = vpack.c.b16 %v126, %v125
    %v142 = vpack.c.b16 %v128, %v127
    %v143 = vpack.c.b16 %v130, %v129
    %v144 = vpack.c.b16 %v132, %v131
    %v145 = vpack.c.b16 %v134, %v133
    %v146 = vpack.c.b16 %v136, %v135
    %v147 = vpack.c.b16 %v138, %v137
    %v148 = vpack.c.b16 %v140, %v139
    %157 = vmatprep.subr.bf16.mxu0 0
    %158 = vmatpush1.bf16.msra.mxu0 %v141
    %159 = vmatprep.subr.bf16.mxu0 0
    %160 = vmatpush1.bf16.msra.mxu0 %v142
    %161 = vmatprep.subr.bf16.mxu0 0
    %162 = vmatpush1.bf16.msra.mxu0 %v143
    %163 = vmatprep.subr.bf16.mxu0 0
    %164 = vmatpush1.bf16.msra.mxu0 %v144
    %165 = vmatprep.subr.bf16.mxu0 0
    %166 = vmatpush1.bf16.msra.mxu0 %v145
    %167 = vmatprep.subr.bf16.mxu0 0
    %168 = vmatpush1.bf16.msra.mxu0 %v146
    %169 = vmatprep.subr.bf16.mxu0 0
    %170 = vmatpush1.bf16.msra.mxu0 %v147
    %171 = vmatprep.subr.bf16.mxu0 0
    %172 = vmatpush1.bf16.msra.mxu0 %v148
    %173 = vmatprep.subr.bf16.mxu0 0
    %174 = vmatpush1.bf16.msra.mxu0 0
    %175 = vmatprep.subr.bf16.mxu0 0
    %176 = vmatpush1.bf16.msra.mxu0 0
    %177 = vmatprep.subr.bf16.mxu0 0
    %178 = vmatpush1.bf16.msra.mxu0 0
    %179 = vmatprep.subr.bf16.mxu0 0
    %180 = vmatpush1.bf16.msra.mxu0 0
    %181 = vmatprep.subr.bf16.mxu0 0
    %182 = vmatpush1.bf16.msra.mxu0 0
    %183 = vmatprep.subr.bf16.mxu0 0
    %184 = vmatpush1.bf16.msra.mxu0 0
    %185 = vmatprep.subr.bf16.mxu0 0
    %186 = vmatpush1.bf16.msra.mxu0 0
    %187 = vmatprep.subr.bf16.mxu0 0
    %188 = vmatpush1.bf16.msra.mxu0 0
    %189 = vmatprep.mubr.bf16.mxu0 0
    %190 = vmatmul.mubr.bf16.gmra.mrb[0].mxu0 %v85
    %v191 = vpop.f32.mrb[0].mxu0
    %v192 = vadd.f32 %v107, %v191
    %v193 = vpop.f32.mrb[0].mxu0
    %v194 = vpop.f32.mrb[0].mxu0
    %v195 = vadd.f32 %v107, %v194
    %v196 = vpop.f32.mrb[0].mxu0
    %197 = vdwg.mxu0
    %v198 = vmax.f32 %v192, 0.0
    %v199 = vmax.f32 %v195, 0.0
    %v200 = vpack.c.bf16 %v199, %v198
    %v201 = vld [vmem:[#allocation7] sm:$0xf]
    %v202 = vld [vmem:[#allocation7 + $0x4] sm:$0xf]
    %v203 = vld [vmem:[#allocation7 + $0x8] sm:$0xf]
    %v204 = vld [vmem:[#allocation7 + $0xc] sm:$0xf]
    %v205 = vld [vmem:[#allocation7 + $0x10] sm:$0xf]
    %v206 = vld [vmem:[#allocation7 + $0x14] sm:$0xf]
    %v207 = vld [vmem:[#allocation7 + $0x18] sm:$0xf]
    %v208 = vld [vmem:[#allocation7 + $0x1c] sm:$0xf]
    %v209 = vld [vmem:[#allocation7 + $0x20] sm:$0xf]
    %v210 = vld [vmem:[#allocation7 + $0x24] sm:$0xf]
    %v211 = vld [vmem:[#allocation7 + $0x28] sm:$0xf]
    %v212 = vld [vmem:[#allocation7 + $0x2c] sm:$0xf]
    %v213 = vld [vmem:[#allocation7 + $0x30] sm:$0xf]
    %v214 = vld [vmem:[#allocation7 + $0x34] sm:$0xf]
    %v215 = vld [vmem:[#allocation7 + $0x38] sm:$0xf]
    %v216 = vld [vmem:[#allocation7 + $0x3c] sm:$0xf]
    %v217 = vld [vmem:[%s4] sm:$0x1]
    %v219 = vlaneseq
    %v220 = vshrl.u32 %v219, 7
    %v221 = vsub.s32 0, %v220
    %v222 = vrot.slane %v217, %v221
    %v240 = vunpack.c.l.b16 %v201
    %v241 = vunpack.c.l.b16 %v202
    %v242 = vunpack.c.l.b16 %v203
    %v243 = vunpack.c.l.b16 %v204
    %v244 = vunpack.c.l.b16 %v205
    %v245 = vunpack.c.l.b16 %v206
    %v246 = vunpack.c.l.b16 %v207
    %v247 = vunpack.c.l.b16 %v208
    %v248 = vunpack.c.l.b16 %v209
    %v249 = vunpack.c.l.b16 %v210
    %v250 = vunpack.c.l.b16 %v211
    %v251 = vunpack.c.l.b16 %v212
    %v252 = vunpack.c.l.b16 %v213
    %v253 = vunpack.c.l.b16 %v214
    %v254 = vunpack.c.l.b16 %v215
    %v255 = vunpack.c.l.b16 %v216
    %v256 = vpack.c.b16 %v241, %v240
    %v257 = vpack.c.b16 %v243, %v242
    %v258 = vpack.c.b16 %v245, %v244
    %v259 = vpack.c.b16 %v247, %v246
    %v260 = vpack.c.b16 %v249, %v248
    %v261 = vpack.c.b16 %v251, %v250
    %v262 = vpack.c.b16 %v253, %v252
    %v263 = vpack.c.b16 %v255, %v254
    %272 = vmatprep.subr.bf16.mxu0 0
    %273 = vmatpush1.bf16.msra.mxu0 %v256
    %274 = vmatprep.subr.bf16.mxu0 0
    %275 = vmatpush1.bf16.msra.mxu0 %v257
    %276 = vmatprep.subr.bf16.mxu0 0
    %277 = vmatpush1.bf16.msra.mxu0 %v258
    %278 = vmatprep.subr.bf16.mxu0 0
    %279 = vmatpush1.bf16.msra.mxu0 %v259
    %280 = vmatprep.subr.bf16.mxu0 0
    %281 = vmatpush1.bf16.msra.mxu0 %v260
    %282 = vmatprep.subr.bf16.mxu0 0
    %283 = vmatpush1.bf16.msra.mxu0 %v261
    %284 = vmatprep.subr.bf16.mxu0 0
    %285 = vmatpush1.bf16.msra.mxu0 %v262
    %286 = vmatprep.subr.bf16.mxu0 0
    %287 = vmatpush1.bf16.msra.mxu0 %v263
    %288 = vmatprep.subr.bf16.mxu0 0
    %289 = vmatpush1.bf16.msra.mxu0 0
    %290 = vmatprep.subr.bf16.mxu0 0
    %291 = vmatpush1.bf16.msra.mxu0 0
    %292 = vmatprep.subr.bf16.mxu0 0
    %293 = vmatpush1.bf16.msra.mxu0 0
    %294 = vmatprep.subr.bf16.mxu0 0
    %295 = vmatpush1.bf16.msra.mxu0 0
    %296 = vmatprep.subr.bf16.mxu0 0
    %297 = vmatpush1.bf16.msra.mxu0 0
    %298 = vmatprep.subr.bf16.mxu0 0
    %299 = vmatpush1.bf16.msra.mxu0 0
    %300 = vmatprep.subr.bf16.mxu0 0
    %301 = vmatpush1.bf16.msra.mxu0 0
    %302 = vmatprep.subr.bf16.mxu0 0
    %303 = vmatpush1.bf16.msra.mxu0 0
    %304 = vmatprep.mubr.bf16.mxu0 0
    %305 = vmatmul.mubr.bf16.gmra.mrb[0].mxu0 %v200
    %v306 = vpop.f32.mrb[0].mxu0
    %v307 = vadd.f32 %v222, %v306
    %v308 = vpop.f32.mrb[0].mxu0
    %v309 = vpop.f32.mrb[0].mxu0
    %v310 = vadd.f32 %v222, %v309
    %v311 = vpop.f32.mrb[0].mxu0
    %312 = vdwg.mxu0
    %v313 = vmax.f32 %v307, 0.0
    %v314 = vmax.f32 %v310, 0.0
    %v315 = vpack.c.bf16 %v314, %v313
    %s316 = scalar_lea.vmem [#allocation7], 64
    %v317 = vld [vmem:[%s316] sm:$0xf]
    %v318 = vld [vmem:[%s316 + $0x4] sm:$0xf]
    %v319 = vld [vmem:[%s316 + $0x8] sm:$0xf]
    %v320 = vld [vmem:[%s316 + $0xc] sm:$0xf]
    %v321 = vld [vmem:[%s316 + $0x10] sm:$0xf]
    %v322 = vld [vmem:[%s316 + $0x14] sm:$0xf]
    %v323 = vld [vmem:[%s316 + $0x18] sm:$0xf]
    %v324 = vld [vmem:[%s316 + $0x1c] sm:$0xf]
    %v325 = vld [vmem:[%s316 + $0x20] sm:$0xf]
    %v326 = vld [vmem:[%s316 + $0x24] sm:$0xf]
    %v327 = vld [vmem:[%s316 + $0x28] sm:$0xf]
    %v328 = vld [vmem:[%s316 + $0x2c] sm:$0xf]
    %v329 = vld [vmem:[%s316 + $0x30] sm:$0xf]
    %v330 = vld [vmem:[%s316 + $0x34] sm:$0xf]
    %v331 = vld [vmem:[%s316 + $0x38] sm:$0xf]
    %v332 = vld [vmem:[%s316 + $0x3c] sm:$0xf]
    %s333 = scalar_lea.vmem %s4, 1
    %v334 = vld [vmem:[%s333] sm:$0x1]
    %v336 = vlaneseq
    %v337 = vshrl.u32 %v336, 7
    %v338 = vsub.s32 0, %v337
    %v339 = vrot.slane %v334, %v338
    %v357 = vunpack.c.l.b16 %v317
    %v358 = vunpack.c.l.b16 %v318
    %v359 = vunpack.c.l.b16 %v319
    %v360 = vunpack.c.l.b16 %v320
    %v361 = vunpack.c.l.b16 %v321
    %v362 = vunpack.c.l.b16 %v322
    %v363 = vunpack.c.l.b16 %v323
    %v364 = vunpack.c.l.b16 %v324
    %v365 = vunpack.c.l.b16 %v325
    %v366 = vunpack.c.l.b16 %v326
    %v367 = vunpack.c.l.b16 %v327
    %v368 = vunpack.c.l.b16 %v328
    %v369 = vunpack.c.l.b16 %v329
    %v370 = vunpack.c.l.b16 %v330
    %v371 = vunpack.c.l.b16 %v331
    %v372 = vunpack.c.l.b16 %v332
    %v373 = vpack.c.b16 %v358, %v357
    %v374 = vpack.c.b16 %v360, %v359
    %v375 = vpack.c.b16 %v362, %v361
    %v376 = vpack.c.b16 %v364, %v363
    %v377 = vpack.c.b16 %v366, %v365
    %v378 = vpack.c.b16 %v368, %v367
    %v379 = vpack.c.b16 %v370, %v369
    %v380 = vpack.c.b16 %v372, %v371
    %389 = vmatprep.subr.bf16.mxu0 0
    %390 = vmatpush1.bf16.msra.mxu0 %v373
    %391 = vmatprep.subr.bf16.mxu0 0
    %392 = vmatpush1.bf16.msra.mxu0 %v374
    %393 = vmatprep.subr.bf16.mxu0 0
    %394 = vmatpush1.bf16.msra.mxu0 %v375
    %395 = vmatprep.subr.bf16.mxu0 0
    %396 = vmatpush1.bf16.msra.mxu0 %v376
    %397 = vmatprep.subr.bf16.mxu0 0
    %398 = vmatpush1.bf16.msra.mxu0 %v377
    %399 = vmatprep.subr.bf16.mxu0 0
    %400 = vmatpush1.bf16.msra.mxu0 %v378
    %401 = vmatprep.subr.bf16.mxu0 0
    %402 = vmatpush1.bf16.msra.mxu0 %v379
    %403 = vmatprep.subr.bf16.mxu0 0
    %404 = vmatpush1.bf16.msra.mxu0 %v380
    %405 = vmatprep.subr.bf16.mxu0 0
    %406 = vmatpush1.bf16.msra.mxu0 0
    %407 = vmatprep.subr.bf16.mxu0 0
    %408 = vmatpush1.bf16.msra.mxu0 0
    %409 = vmatprep.subr.bf16.mxu0 0
    %410 = vmatpush1.bf16.msra.mxu0 0
    %411 = vmatprep.subr.bf16.mxu0 0
    %412 = vmatpush1.bf16.msra.mxu0 0
    %413 = vmatprep.subr.bf16.mxu0 0
    %414 = vmatpush1.bf16.msra.mxu0 0
    %415 = vmatprep.subr.bf16.mxu0 0
    %416 = vmatpush1.bf16.msra.mxu0 0
    %417 = vmatprep.subr.bf16.mxu0 0
    %418 = vmatpush1.bf16.msra.mxu0 0
    %419 = vmatprep.subr.bf16.mxu0 0
    %420 = vmatpush1.bf16.msra.mxu0 0
    %421 = vmatprep.mubr.bf16.mxu0 0
    %422 = vmatmul.mubr.bf16.gmra.mrb[0].mxu0 %v315
    %v423 = vpop.f32.mrb[0].mxu0
    %v424 = vadd.f32 %v339, %v423
    %v425 = vpop.f32.mrb[0].mxu0
    %v426 = vpop.f32.mrb[0].mxu0
    %v427 = vadd.f32 %v339, %v426
    %v428 = vpop.f32.mrb[0].mxu0
    %429 = vdwg.mxu0
    %v430 = vmax.f32 %v424, 0.0
    %v431 = vmax.f32 %v427, 0.0
    %v432 = vpack.c.bf16 %v431, %v430
    %v433 = vld [vmem:[#allocation8] sm:$0xf]
    %v434 = vld [vmem:[#allocation8 + $0x4] sm:$0xf]
    %v435 = vld [vmem:[#allocation8 + $0x8] sm:$0xf]
    %v436 = vld [vmem:[#allocation8 + $0xc] sm:$0xf]
    %v437 = vld [vmem:[#allocation8 + $0x10] sm:$0xf]
    %v438 = vld [vmem:[#allocation8 + $0x14] sm:$0xf]
    %v439 = vld [vmem:[#allocation8 + $0x18] sm:$0xf]
    %v440 = vld [vmem:[#allocation8 + $0x1c] sm:$0xf]
    %v441 = vld [vmem:[#allocation8 + $0x20] sm:$0xf]
    %v442 = vld [vmem:[#allocation8 + $0x24] sm:$0xf]
    %v443 = vld [vmem:[#allocation8 + $0x28] sm:$0xf]
    %v444 = vld [vmem:[#allocation8 + $0x2c] sm:$0xf]
    %v445 = vld [vmem:[#allocation8 + $0x30] sm:$0xf]
    %v446 = vld [vmem:[#allocation8 + $0x34] sm:$0xf]
    %v447 = vld [vmem:[#allocation8 + $0x38] sm:$0xf]
    %v448 = vld [vmem:[#allocation8 + $0x3c] sm:$0xf]
    %v449 = vld [vmem:[%s6] sm:$0x1]
    %v451 = vlaneseq
    %v452 = vshrl.u32 %v451, 7
    %v453 = vsub.s32 0, %v452
    %v454 = vrot.slane %v449, %v453
    %v472 = vunpack.c.l.b16 %v433
    %v473 = vunpack.c.l.b16 %v434
    %v474 = vunpack.c.l.b16 %v435
    %v475 = vunpack.c.l.b16 %v436
    %v476 = vunpack.c.l.b16 %v437
    %v477 = vunpack.c.l.b16 %v438
    %v478 = vunpack.c.l.b16 %v439
    %v479 = vunpack.c.l.b16 %v440
    %v480 = vunpack.c.l.b16 %v441
    %v481 = vunpack.c.l.b16 %v442
    %v482 = vunpack.c.l.b16 %v443
    %v483 = vunpack.c.l.b16 %v444
    %v484 = vunpack.c.l.b16 %v445
    %v485 = vunpack.c.l.b16 %v446
    %v486 = vunpack.c.l.b16 %v447
    %v487 = vunpack.c.l.b16 %v448
    %v488 = vpack.c.b16 %v473, %v472
    %v489 = vpack.c.b16 %v475, %v474
    %v490 = vpack.c.b16 %v477, %v476
    %v491 = vpack.c.b16 %v479, %v478
    %v492 = vpack.c.b16 %v481, %v480
    %v493 = vpack.c.b16 %v483, %v482
    %v494 = vpack.c.b16 %v485, %v484
    %v495 = vpack.c.b16 %v487, %v486
    %504 = vmatprep.subr.bf16.mxu0 0
    %505 = vmatpush1.bf16.msra.mxu0 %v488
    %506 = vmatprep.subr.bf16.mxu0 0
    %507 = vmatpush1.bf16.msra.mxu0 %v489
    %508 = vmatprep.subr.bf16.mxu0 0
    %509 = vmatpush1.bf16.msra.mxu0 %v490
    %510 = vmatprep.subr.bf16.mxu0 0
    %511 = vmatpush1.bf16.msra.mxu0 %v491
    %512 = vmatprep.subr.bf16.mxu0 0
    %513 = vmatpush1.bf16.msra.mxu0 %v492
    %514 = vmatprep.subr.bf16.mxu0 0
    %515 = vmatpush1.bf16.msra.mxu0 %v493
    %516 = vmatprep.subr.bf16.mxu0 0
    %517 = vmatpush1.bf16.msra.mxu0 %v494
    %518 = vmatprep.subr.bf16.mxu0 0
    %519 = vmatpush1.bf16.msra.mxu0 %v495
    %520 = vmatprep.subr.bf16.mxu0 0
    %521 = vmatpush1.bf16.msra.mxu0 0
    %522 = vmatprep.subr.bf16.mxu0 0
    %523 = vmatpush1.bf16.msra.mxu0 0
    %524 = vmatprep.subr.bf16.mxu0 0
    %525 = vmatpush1.bf16.msra.mxu0 0
    %526 = vmatprep.subr.bf16.mxu0 0
    %527 = vmatpush1.bf16.msra.mxu0 0
    %528 = vmatprep.subr.bf16.mxu0 0
    %529 = vmatpush1.bf16.msra.mxu0 0
    %530 = vmatprep.subr.bf16.mxu0 0
    %531 = vmatpush1.bf16.msra.mxu0 0
    %532 = vmatprep.subr.bf16.mxu0 0
    %533 = vmatpush1.bf16.msra.mxu0 0
    %534 = vmatprep.subr.bf16.mxu0 0
    %535 = vmatpush1.bf16.msra.mxu0 0
    %536 = vmatprep.mubr.bf16.mxu0 0
    %537 = vmatmul.mubr.bf16.gmra.mrb[0].mxu0 %v432
    %v538 = vpop.f32.mrb[0].mxu0
    %v539 = vadd.f32 %v454, %v538
    %v540 = vpop.f32.mrb[0].mxu0
    %v541 = vpop.f32.mrb[0].mxu0
    %v542 = vadd.f32 %v454, %v541
    %v543 = vpop.f32.mrb[0].mxu0
    %544 = vdwg.mxu0
    %545 = vst [vmem:[#allocation10] sm:$0xff] %v539
    %546 = vst [vmem:[#allocation10 + $0x8] sm:$0xff] %v542
    // Predicated region
    $region46: #{tpu_custom_call.1} parent=1 // pred_check
      _
    $region47: #{tpu_custom_call.1} parent=1 // pred_check_branch
      %548 = sbr.rel (0) target = $region49
    $region48: #{tpu_custom_call.1} parent=1 // pred_region
      %s550 = ssub.s32 256, 256
      %551 = vsyncadd [#allocation4], %s550
      %s552 = sshll.u32 [#allocation10], 4
      %s553 = int_to_ptr.vmem [resolvable:$true] %s552
      %558 = dma.vmem_to_hbm [thread:$0]  %s553, 256, %s7, [#allocation4], 128, 128, 8
    $region49: #{tpu_custom_call.1} parent=1 // pred_fallthru
      _
    // Predicated region
    $region50: #{tpu_custom_call.1} parent=1 // pred_check
      _
    $region51: #{tpu_custom_call.1} parent=1 // pred_check_branch
      %560 = sbr.rel (0) target = $region53
    $region52: #{tpu_custom_call.1} parent=1 // pred_region
      %561 = dma.done [#allocation4], 256
    $region53: #{tpu_custom_call.1} parent=1 // pred_fallthru
      _
    %562 = vsyncpa [#allocation3], 1
    %563 = vsyncpa [#allocation6], 1
    %564 = vsyncpa [#allocation9], 1
    %565 = vsyncpa [#allocation4], 1

</llo_original>
